<compile_context>
chip_gen: v7x
topology: tpu7x:2x2x1
jax: 0.10.0
libtpu: 0.0.40
codegen_flags: <defaults>
</compile_context>

<pallas_src>
import functools

import jax
import jax.numpy as jnp
from jax import lax
from jax.experimental import pallas as pl
from jax.experimental.pallas import tpu as pltpu


def _round_up(x, m):
    return ((x + m - 1) // m) * m


def _cdiv(a, b):
    return (a + b - 1) // b


def _embed_add_kernel(chan_ref, time_ref, x_ref, tbl_ref, o_ref, *, vs):
    # chan_ref / time_ref : (TILE, 1)    int32
    # x_ref               : (TILE, D)    x dtype (f32 or bf16)
    # tbl_ref             : (Vs+Vt, D)   table dtype (== x dtype)
    # o_ref               : (TILE, D)    x dtype
    tile = x_ref.shape[0]
    v2 = tbl_ref.shape[0]

    cidx = chan_ref[...]                                   # (TILE, 1)
    tidx = time_ref[...]                                   # (TILE, 1)

    # Single "two-hot" gather on the MXU: rows of the fused table are
    # [spa_0..spa_{Vs-1}, tem_0..tem_{Vt-1}]; one matmul yields spa+tem summed.
    iota = lax.broadcasted_iota(jnp.int32, (tile, v2), 1)
    two_hot = (((iota == cidx) & (cidx < vs)) |            # spa row (guard OOB)
               ((iota == tidx + vs) & (tidx >= 0)))        # tem row (guard OOB)
    two_hot = two_hot.astype(tbl_ref.dtype)

    emb = jnp.dot(two_hot, tbl_ref[...], preferred_element_type=jnp.float32)
    o_ref[...] = (x_ref[...].astype(jnp.float32) + emb).astype(o_ref.dtype)


def spatio_temporal_embedding_add(x, in_chan_matrix, in_time_matrix,
                                  spa_table, tem_table, *,
                                  max_tile_bytes=2 * 1024 * 1024,
                                  donate_x=False):
    """x: (B, T, D); in_chan_matrix, in_time_matrix: (B, T) int;
    spa_table: (Vs, D); tem_table: (Vt, D)  ->  (B, T, D) in x.dtype."""
    B, T, D = x.shape
    Vs, Ds = spa_table.shape
    Vt, Dt = tem_table.shape
    assert Ds == D and Dt == D, "embedding dim mismatch"

    # Fused table -> one whole-table VMEM block, one two-hot matmul in-kernel.
    # (Callers invoking this in a loop should pre-fuse/hoist this concat.)
    table = jnp.concatenate([spa_table.astype(x.dtype),
                             tem_table.astype(x.dtype)], axis=0)
    table_bytes = (Vs + Vt) * D * table.dtype.itemsize
    if table_bytes > (2 << 20):
        # TODO(synk): for large V*D, row-gather the tables (pl.Element / manual
        # DMA) instead of keeping the whole table VMEM-resident.
        raise NotImplementedError("embedding tables too large for whole-table "
                                  "VMEM residency")

    rows = B * T
    in_bytes = x.dtype.itemsize
    out_bytes = in_bytes
    bytes_per_row_x = D * in_bytes

    # ---- tile selection --------------------------------------------------
    # Per-row VMEM while pipelining:
    #   x tile (double-buffered) + out tile (double-buffered)
    #   + two (tr, 1) int32 index blocks lane-padded to 128 lanes,
    #     double-buffered: 2 streams * 2 bufs * 512 B/row = 2048 B/row.
    per_row_vmem = 2 * D * in_bytes + 2 * D * out_bytes + 2048
    vmem_budget = (28 << 20) - table_bytes        # headroom under vmem_limit
    cap_rows = min(max_tile_bytes // bytes_per_row_x,
                   vmem_budget // per_row_vmem)
    cap_rows = max(128, (cap_rows // 128) * 128)

    if rows <= cap_rows:
        tr, n_tiles = rows, 1                     # exact single block
    else:
        # Prefer an even step count so ("parallel",) splits evenly across
        # v7x's two TensorCores; 128-row granularity may force an odd count.
        n0 = _cdiv(rows, cap_rows)
        tr, n_tiles = None, None
        for n_try in range(n0, n0 + 4):
            tr_try = _round_up(_cdiv(rows, n_try), 128)
            n_act = _cdiv(rows, tr_try)
            if tr is None:
                tr, n_tiles = tr_try, n_act
            if n_act % 2 == 0:
                tr, n_tiles = tr_try, n_act
                break

    x_flat = x.reshape(rows, D)
    chan = in_chan_matrix.reshape(rows, 1).astype(jnp.int32)
    tidx = in_time_matrix.reshape(rows, 1).astype(jnp.int32)

    vmem_need = tr * per_row_vmem + table_bytes
    vmem_limit = int(min(48 << 20, max(32 << 20, vmem_need + (4 << 20))))

    cost = pl.CostEstimate(
        flops=2 * rows * (Vs + Vt) * D + rows * D,
        transcendentals=0,
        bytes_accessed=(rows * D * (in_bytes + out_bytes)   # read x + write out
                        + rows * 8                          # index streams
                        + table_bytes))                     # fused table

    grid_spec = pltpu.PrefetchScalarGridSpec(
        num_scalar_prefetch=0,
        grid=(n_tiles,),
        in_specs=[
            pl.BlockSpec((tr, 1), lambda i: (i, 0)),        # chan indices
            pl.BlockSpec((tr, 1), lambda i: (i, 0)),        # time indices
            pl.BlockSpec((tr, D), lambda i: (i, 0)),        # x rows
            pl.BlockSpec((Vs + Vt, D), lambda i: (0, 0),
                         pipeline_mode=pl.Buffered(1)),     # fused table (1 buf)
        ],
        out_specs=pl.BlockSpec((tr, D), lambda i: (i, 0)),
    )

    out_flat = pl.pallas_call(
        functools.partial(_embed_add_kernel, vs=Vs),
        out_shape=jax.ShapeDtypeStruct((rows, D), x.dtype),
        grid_spec=grid_spec,
        compiler_params=pltpu.CompilerParams(
            dimension_semantics=("parallel",),               # v7x megacore
            vmem_limit_bytes=vmem_limit),
        cost_estimate=cost,
        input_output_aliases=({2: 0} if donate_x else {}),
    )(chan, tidx, x_flat, table)

    return out_flat.reshape(B, T, D)


if __name__ == "__main__":
    # Module config (matches VqhbrBackbone: num_embeddings=16 for both tables).
    num_embeddings = 16
    embed_dim = 128
    B, seq_len = 2, 13          # rows=26: single exact (full-array) block

    key = jax.random.PRNGKey(0)
    k_x, k_c, k_t, k_s, k_e = jax.random.split(key, 5)

    x = jax.random.normal(k_x, (B, seq_len, embed_dim), dtype=jnp.float32)
    in_chan = jax.random.randint(k_c, (B, seq_len), 0, num_embeddings,
                                 dtype=jnp.int32)
    in_time = jax.random.randint(k_t, (B, seq_len), 0, num_embeddings,
                                 dtype=jnp.int32)
    # nn.Embedding weights ~ N(0, 1) by default.
    spa_table = jax.random.normal(k_s, (num_embeddings, embed_dim),
                                  dtype=jnp.float32)
    tem_table = jax.random.normal(k_e, (num_embeddings, embed_dim),
                                  dtype=jnp.float32)

    out = jax.block_until_ready(
        spatio_temporal_embedding_add(x, in_chan, in_time,
                                      spa_table, tem_table))
    ref = (x + jnp.take(spa_table, in_chan, axis=0)
             + jnp.take(tem_table, in_time, axis=0))
    assert out.shape == ref.shape
    assert jnp.allclose(out, ref, atol=1e-5, rtol=1e-5)

    # Multi-tile grid + ragged last block (partial boundary block, no pad/slice).
    B2, seq2 = 4, 260           # rows=1040; max_tile_bytes=128 KiB -> tr=256,
    #                             5 grid steps, last block covers only 16 rows.
    kx2, kc2, kt2 = jax.random.split(jax.random.PRNGKey(1), 3)
    x2 = jax.random.normal(kx2, (B2, seq2, embed_dim), dtype=jnp.float32)
    c2 = jax.random.randint(kc2, (B2, seq2), 0, num_embeddings, dtype=jnp.int32)
    t2 = jax.random.randint(kt2, (B2, seq2), 0, num_embeddings, dtype=jnp.int32)
    out2 = jax.block_until_ready(
        spatio_temporal_embedding_add(x2, c2, t2, spa_table, tem_table,
                                      max_tile_bytes=128 * 1024))
    ref2 = (x2 + jnp.take(spa_table, c2, axis=0)
               + jnp.take(tem_table, t2, axis=0))
    assert jnp.allclose(out2, ref2, atol=1e-5, rtol=1e-5)

    # bf16 fast path (halves HBM bytes for this bandwidth-bound stage).
    xb = x2.astype(jnp.bfloat16)
    sb = spa_table.astype(jnp.bfloat16)
    tb = tem_table.astype(jnp.bfloat16)
    out3 = jax.block_until_ready(
        spatio_temporal_embedding_add(xb, c2, t2, sb, tb))
    ref3 = (xb.astype(jnp.float32)
            + jnp.take(sb, c2, axis=0).astype(jnp.float32)
            + jnp.take(tb, t2, axis=0).astype(jnp.float32))
    assert out3.dtype == jnp.bfloat16
    assert jnp.allclose(out3.astype(jnp.float32), ref3, atol=0.1, rtol=0.05)

    print("KERNEL_OK")
</pallas_src>

<mosaic_0001>
module attributes {stable_mosaic.version = 11 : i64} {
  func.func @_embed_add_kernel(%arg0: i32, %arg1: memref<26x1xi32, #tpu.memory_space<vmem>>, %arg2: memref<26x1xi32, #tpu.memory_space<vmem>>, %arg3: memref<26x128xf32, #tpu.memory_space<vmem>>, %arg4: memref<32x128xf32, #tpu.memory_space<vmem>>, %arg5: memref<26x128xf32, #tpu.memory_space<vmem>>) attributes {dimension_semantics = [#tpu.dimension_semantics<parallel>], iteration_bounds = array<i64: 1>, scalar_prefetch = 0 : i64, scratch_operands = 0 : i64, tpu.core_type = #tpu.core_type<tc>, window_params = [{transform_indices = @transform_0, window_bounds = array<i64: 26, 1>}, {transform_indices = @transform_1, window_bounds = array<i64: 26, 1>}, {transform_indices = @transform_2, window_bounds = array<i64: 26, 128>}, {pipeline_mode = #tpu.pipeline_mode<synchronous>, transform_indices = @transform_3, window_bounds = array<i64: 32, 128>}, {transform_indices = @transform_4, window_bounds = array<i64: 26, 128>}]} {
    %c0 = arith.constant 0 : index
    %c0_0 = arith.constant 0 : index
    %0 = vector.load %arg1[%c0, %c0_0] : memref<26x1xi32, #tpu.memory_space<vmem>>, vector<26x1xi32>
    %c0_1 = arith.constant 0 : index
    %c0_2 = arith.constant 0 : index
    %1 = vector.load %arg2[%c0_1, %c0_2] : memref<26x1xi32, #tpu.memory_space<vmem>>, vector<26x1xi32>
    %2 = tpu.iota {dimensions = array<i32: 1>} : vector<26x32xi32>
    %3 = vector.broadcast %0 : vector<26x1xi32> to vector<26x32xi32>
    %4 = arith.cmpi eq, %2, %3 : vector<26x32xi32>
    %c16_i32 = arith.constant 16 : i32
    %5 = vector.broadcast %c16_i32 : i32 to vector<26x1xi32>
    %6 = arith.cmpi slt, %0, %5 : vector<26x1xi32>
    %7 = vector.broadcast %6 : vector<26x1xi1> to vector<26x32xi1>
    %8 = arith.andi %4, %7 : vector<26x32xi1>
    %c16_i32_3 = arith.constant 16 : i32
    %9 = vector.broadcast %c16_i32_3 : i32 to vector<26x1xi32>
    %10 = arith.addi %1, %9 : vector<26x1xi32>
    %11 = vector.broadcast %10 : vector<26x1xi32> to vector<26x32xi32>
    %12 = arith.cmpi eq, %2, %11 : vector<26x32xi32>
    %c0_i32 = arith.constant 0 : i32
    %13 = vector.broadcast %c0_i32 : i32 to vector<26x1xi32>
    %14 = arith.cmpi sge, %1, %13 : vector<26x1xi32>
    %15 = vector.broadcast %14 : vector<26x1xi1> to vector<26x32xi1>
    %16 = arith.andi %12, %15 : vector<26x32xi1>
    %17 = arith.ori %8, %16 : vector<26x32xi1>
    %18 = arith.extui %17 : vector<26x32xi1> to vector<26x32xi32>
    %19 = arith.sitofp %18 : vector<26x32xi32> to vector<26x32xf32>
    %c0_4 = arith.constant 0 : index
    %c0_5 = arith.constant 0 : index
    %20 = vector.load %arg4[%c0_4, %c0_5] : memref<32x128xf32, #tpu.memory_space<vmem>>, vector<32x128xf32>
    %cst = arith.constant dense<0.000000e+00> : vector<26x128xf32>
    %21 = tpu.matmul %19, %20, %cst {dimension_numbers = #tpu.dot_dimension_numbers<[1], [0], [0], [1], [0, 0, 1, 1], [], []>} : vector<26x32xf32>, vector<32x128xf32>, vector<26x128xf32> -> vector<26x128xf32>
    %c0_6 = arith.constant 0 : index
    %c0_7 = arith.constant 0 : index
    %22 = vector.load %arg3[%c0_6, %c0_7] : memref<26x128xf32, #tpu.memory_space<vmem>>, vector<26x128xf32>
    %23 = arith.addf %22, %21 : vector<26x128xf32>
    %c0_8 = arith.constant 0 : index
    %c0_9 = arith.constant 0 : index
    %24 = vector.load %arg5[%c0_8, %c0_9] : memref<26x128xf32, #tpu.memory_space<vmem>>, vector<26x128xf32>
    tpu.vector_store %arg5[%c0_8, %c0_9], %23 {strides = array<i32>} : memref<26x128xf32, #tpu.memory_space<vmem>>, vector<26x128xf32>,
    return
  }
  func.func @transform_0(%arg0: i32) -> (i32, i32) {
    %c0_i32 = arith.constant 0 : i32
    %c0_i32_0 = arith.constant 0 : i32
    return %arg0, %c0_i32 : i32, i32
  }
  func.func @transform_1(%arg0: i32) -> (i32, i32) {
    %c0_i32 = arith.constant 0 : i32
    %c0_i32_0 = arith.constant 0 : i32
    return %arg0, %c0_i32 : i32, i32
  }
  func.func @transform_2(%arg0: i32) -> (i32, i32) {
    %c0_i32 = arith.constant 0 : i32
    %c0_i32_0 = arith.constant 0 : i32
    return %arg0, %c0_i32 : i32, i32
  }
  func.func @transform_3(%arg0: i32) -> (i32, i32) {
    %c0_i32 = arith.constant 0 : i32
    %c0_i32_0 = arith.constant 0 : i32
    %c0_i32_1 = arith.constant 0 : i32
    return %c0_i32, %c0_i32_0 : i32, i32
  }
  func.func @transform_4(%arg0: i32) -> (i32, i32) {
    %c0_i32 = arith.constant 0 : i32
    %c0_i32_0 = arith.constant 0 : i32
    return %arg0, %c0_i32 : i32, i32
  }
}

</mosaic_0001>

<llo_original>
// kernel: tpu_custom_call.1
$region0: #{tpu_custom_call.1}
  #allocation0 [shape = 'u32[]', space=smem, size = 0x4, offset = 0x4, fixed_abs, tag = 'smem constant byte address 0x4 - core index']
  #allocation1 [shape = 'u32[144,128]{1,0:T(1,128)}', space=vmem, size = 0x12000, scoped, tag = 'internal scratch']
  %s0 = inlined_call_operand.vmem [shape: s32[26,1], index: 0, kind: input, shape index: {}]
  %s1 = inlined_call_operand.vmem [shape: s32[26,1], index: 1, kind: input, shape index: {}]
  %s2 = inlined_call_operand.vmem [shape: f32[26,128], index: 2, kind: input, shape index: {}]
  %s3 = inlined_call_operand.vmem [shape: f32[32,128], index: 3, kind: input, shape index: {}]
  %s4 = inlined_call_operand.hbm [shape: f32[26,128], index: 4, kind: output, shape index: {}]
  %s5 = sld [smem:[#allocation0]]
  $region26: #{tpu_custom_call.1} parent=0
    _
  %s7 = ssub.s32 1, %s5
  %s8 = scalar_select 0, %s7, %s5
  $region1: #{tpu_custom_call.1} parent=0
    #allocation2 [shape = 'u8[16384]{0}', space=vmem, size = 0x4000, scoped, tag = 'output window, operand 0, single buffered']
    #allocation3 [shape = 's32[1]{0}', space=sflag, size = 0x4, scoped, tag = 'scoped memory for tpu_custom_call.1']
    %9 = vsyncpa [#allocation3], 0
    // Predicated region
    $region2: #{tpu_custom_call.1} parent=1 // pred_check
      _
    $region3: #{tpu_custom_call.1} parent=1 // pred_check_branch
      %11 = sbr.rel (0) target = $region5
    $region4: #{tpu_custom_call.1} parent=1 // pred_region
      _
    $region5: #{tpu_custom_call.1} parent=1 // pred_fallthru
      _
    // Predicated region
    $region6: #{tpu_custom_call.1} parent=1 // pred_check
      _
    $region7: #{tpu_custom_call.1} parent=1 // pred_check_branch
      %13 = sbr.rel (0) target = $region9
    $region8: #{tpu_custom_call.1} parent=1 // pred_region
      _
    $region9: #{tpu_custom_call.1} parent=1 // pred_fallthru
      _
    // Predicated region
    $region10: #{tpu_custom_call.1} parent=1 // pred_check
      _
    $region11: #{tpu_custom_call.1} parent=1 // pred_check_branch
      %15 = sbr.rel (0) target = $region13
    $region12: #{tpu_custom_call.1} parent=1 // pred_region
      _
    $region13: #{tpu_custom_call.1} parent=1 // pred_fallthru
      _
    // Predicated region
    $region14: #{tpu_custom_call.1} parent=1 // pred_check
      _
    $region15: #{tpu_custom_call.1} parent=1 // pred_check_branch
      %17 = sbr.rel (0) target = $region17
    $region16: #{tpu_custom_call.1} parent=1 // pred_region
      _
    $region17: #{tpu_custom_call.1} parent=1 // pred_fallthru
      _
    %v18 = vld [vmem:[%s0] sm:$0xff]
    %v19 = vld [vmem:[%s0 + $0x8] sm:$0xff]
    %v20 = vld [vmem:[%s0 + $0x10] sm:$0xff]
    %v21 = vld [vmem:[%s0 + $0x18] sm:$0x3]
    %v22 = vld [vmem:[%s1] sm:$0xff]
    %v23 = vld [vmem:[%s1 + $0x8] sm:$0xff]
    %v24 = vld [vmem:[%s1 + $0x10] sm:$0xff]
    %v25 = vld [vmem:[%s1 + $0x18] sm:$0x3]
    %v26 = vlaneseq
    %v27 = vand.u32 %v26, 127
    %28 = vset.pattern.permute.xlu0 0
    %29 = vperm.xlu0 %28, %v18
    %v30 = vpop.permute.xlu0 %29
    %31 = vset.pattern.permute.xlu0 0
    %32 = vperm.xlu0 %31, %v19
    %v33 = vpop.permute.xlu0 %32
    %34 = vset.pattern.permute.xlu0 0
    %35 = vperm.xlu0 %34, %v20
    %v36 = vpop.permute.xlu0 %35
    %37 = vset.pattern.permute.xlu0 0
    %38 = vperm.xlu0 %37, %v21
    %v39 = vpop.permute.xlu0 %38
    %vm40 = vcmp.eq.s32.totalorder %v27, %v30
    %vm41 = vcmp.eq.s32.totalorder %v27, %v33
    %vm42 = vcmp.eq.s32.totalorder %v27, %v36
    %vm43 = vcmp.eq.s32.totalorder %v27, %v39
    %vm44 = vcmp.lt.s32.totalorder %v18, 16
    %vm45 = vcmp.lt.s32.totalorder %v19, 16
    %vm46 = vcmp.lt.s32.totalorder %v20, 16
    %vm47 = vcmp.lt.s32.totalorder %v21, 16
    %v48 = vsel %vm44, 1, 0
    %v49 = vsel %vm45, 1, 0
    %v50 = vsel %vm46, 1, 0
    %v51 = vsel %vm47, 1, 0
    %52 = vset.pattern.permute.xlu0 0
    %53 = vperm.xlu0 %52, %v48
    %v54 = vpop.permute.xlu0 %53
    %55 = vset.pattern.permute.xlu0 0
    %56 = vperm.xlu0 %55, %v49
    %v57 = vpop.permute.xlu0 %56
    %58 = vset.pattern.permute.xlu0 0
    %59 = vperm.xlu0 %58, %v50
    %v60 = vpop.permute.xlu0 %59
    %61 = vset.pattern.permute.xlu0 0
    %62 = vperm.xlu0 %61, %v51
    %v63 = vpop.permute.xlu0 %62
    %vm64 = vcmp.eq.s32.totalorder %v54, 1
    %vm65 = vcmp.eq.s32.totalorder %v57, 1
    %vm66 = vcmp.eq.s32.totalorder %v60, 1
    %vm67 = vcmp.eq.s32.totalorder %v63, 1
    %vm68 = vmand %vm40, %vm64
    %vm69 = vmand %vm41, %vm65
    %vm70 = vmand %vm42, %vm66
    %vm71 = vmand %vm43, %vm67
    %v72 = vadd.s32 %v22, 16
    %v73 = vadd.s32 %v23, 16
    %v74 = vadd.s32 %v24, 16
    %v75 = vadd.s32 %v25, 16
    %76 = vset.pattern.permute.xlu0 0
    %77 = vperm.xlu0 %76, %v72
    %v78 = vpop.permute.xlu0 %77
    %79 = vset.pattern.permute.xlu0 0
    %80 = vperm.xlu0 %79, %v73
    %v81 = vpop.permute.xlu0 %80
    %82 = vset.pattern.permute.xlu0 0
    %83 = vperm.xlu0 %82, %v74
    %v84 = vpop.permute.xlu0 %83
    %85 = vset.pattern.permute.xlu0 0
    %86 = vperm.xlu0 %85, %v75
    %v87 = vpop.permute.xlu0 %86
    %vm88 = vcmp.eq.s32.totalorder %v27, %v78
    %vm89 = vcmp.eq.s32.totalorder %v27, %v81
    %vm90 = vcmp.eq.s32.totalorder %v27, %v84
    %vm91 = vcmp.eq.s32.totalorder %v27, %v87
    %vm92 = vcmp.ge.s32.totalorder %v22, 0
    %vm93 = vcmp.ge.s32.totalorder %v23, 0
    %vm94 = vcmp.ge.s32.totalorder %v24, 0
    %vm95 = vcmp.ge.s32.totalorder %v25, 0
    %v96 = vsel %vm92, 1, 0
    %v97 = vsel %vm93, 1, 0
    %v98 = vsel %vm94, 1, 0
    %v99 = vsel %vm95, 1, 0
    %100 = vset.pattern.permute.xlu0 0
    %101 = vperm.xlu0 %100, %v96
    %v102 = vpop.permute.xlu0 %101
    %103 = vset.pattern.permute.xlu0 0
    %104 = vperm.xlu0 %103, %v97
    %v105 = vpop.permute.xlu0 %104
    %106 = vset.pattern.permute.xlu0 0
    %107 = vperm.xlu0 %106, %v98
    %v108 = vpop.permute.xlu0 %107
    %109 = vset.pattern.permute.xlu0 0
    %110 = vperm.xlu0 %109, %v99
    %v111 = vpop.permute.xlu0 %110
    %vm112 = vcmp.eq.s32.totalorder %v102, 1
    %vm113 = vcmp.eq.s32.totalorder %v105, 1
    %vm114 = vcmp.eq.s32.totalorder %v108, 1
    %vm115 = vcmp.eq.s32.totalorder %v111, 1
    %vm116 = vmand %vm88, %vm112
    %vm117 = vmand %vm89, %vm113
    %vm118 = vmand %vm90, %vm114
    %vm119 = vmand %vm91, %vm115
    %vm120 = vmor %vm68, %vm116
    %vm121 = vmor %vm69, %vm117
    %vm122 = vmor %vm70, %vm118
    %vm123 = vmor %vm71, %vm119
    %v124 = vsel %vm120, 1, 0
    %v125 = vsel %vm121, 1, 0
    %v126 = vsel %vm122, 1, 0
    %v127 = vsel %vm123, 1, 0
    %v128 = vcvt.s32.f32 %v124
    %v129 = vcvt.s32.f32 %v125
    %v130 = vcvt.s32.f32 %v126
    %v131 = vcvt.s32.f32 %v127
    %v132 = vld [vmem:[%s3] sm:$0xff]
    %v133 = vld [vmem:[%s3 + $0x8] sm:$0xff]
    %v134 = vld [vmem:[%s3 + $0x10] sm:$0xff]
    %v135 = vld [vmem:[%s3 + $0x18] sm:$0xff]
    %vm136 = vcmask 261120
    %v138 = vsel %vm136, %v128, 0
    %v141 = vsel %vm136, %v129, 0
    %v144 = vsel %vm136, %v130, 0
    %v147 = vsel %vm136, %v131, 0
    %149 = vmatprep.subr.mxu0 0.0
    %150 = vmatpush1.msra.mxu0 %v132
    %151 = vmatprep.subr.mxu0 0.0
    %152 = vmatpush1.msra.mxu0 %v133
    %153 = vmatprep.subr.mxu0 0.0
    %154 = vmatpush1.msra.mxu0 %v134
    %155 = vmatprep.subr.mxu0 0.0
    %156 = vmatpush1.msra.mxu0 %v135
    %157 = vmatprep.subr.mxu0 0.0
    %158 = vmatpush1.msra.mxu0 0.0
    %159 = vmatprep.subr.mxu0 0.0
    %160 = vmatpush1.msra.mxu0 0.0
    %161 = vmatprep.subr.mxu0 0.0
    %162 = vmatpush1.msra.mxu0 0.0
    %163 = vmatprep.subr.mxu0 0.0
    %164 = vmatpush1.msra.mxu0 0.0
    %165 = vmatprep.subr.mxu0 0.0
    %166 = vmatpush1.msra.mxu0 0.0
    %167 = vmatprep.subr.mxu0 0.0
    %168 = vmatpush1.msra.mxu0 0.0
    %169 = vmatprep.subr.mxu0 0.0
    %170 = vmatpush1.msra.mxu0 0.0
    %171 = vmatprep.subr.mxu0 0.0
    %172 = vmatpush1.msra.mxu0 0.0
    %173 = vmatprep.subr.mxu0 0.0
    %174 = vmatpush1.msra.mxu0 0.0
    %175 = vmatprep.subr.mxu0 0.0
    %176 = vmatpush1.msra.mxu0 0.0
    %177 = vmatprep.subr.mxu0 0.0
    %178 = vmatpush1.msra.mxu0 0.0
    %179 = vmatprep.subr.mxu0 0.0
    %180 = vmatpush1.msra.mxu0 0.0
    %181 = vmatprep.subr.mxu0 0.0
    %182 = vmatpush1.msra.mxu0 0.0
    %183 = vmatprep.subr.mxu0 0.0
    %184 = vmatpush1.msra.mxu0 0.0
    %185 = vmatprep.subr.mxu0 0.0
    %186 = vmatpush1.msra.mxu0 0.0
    %187 = vmatprep.subr.mxu0 0.0
    %188 = vmatpush1.msra.mxu0 0.0
    %189 = vmatprep.subr.mxu0 0.0
    %190 = vmatpush1.msra.mxu0 0.0
    %191 = vmatprep.subr.mxu0 0.0
    %192 = vmatpush1.msra.mxu0 0.0
    %193 = vmatprep.subr.mxu0 0.0
    %194 = vmatpush1.msra.mxu0 0.0
    %195 = vmatprep.subr.mxu0 0.0
    %196 = vmatpush1.msra.mxu0 0.0
    %197 = vmatprep.subr.mxu0 0.0
    %198 = vmatpush1.msra.mxu0 0.0
    %199 = vmatprep.subr.mxu0 0.0
    %200 = vmatpush1.msra.mxu0 0.0
    %201 = vmatprep.subr.mxu0 0.0
    %202 = vmatpush1.msra.mxu0 0.0
    %203 = vmatprep.subr.mxu0 0.0
    %204 = vmatpush1.msra.mxu0 0.0
    %205 = vmatprep.subr.mxu0 0.0
    %206 = vmatpush1.msra.mxu0 0.0
    %207 = vmatprep.subr.mxu0 0.0
    %208 = vmatpush1.msra.mxu0 0.0
    %209 = vmatprep.subr.mxu0 0.0
    %210 = vmatpush1.msra.mxu0 0.0
    %211 = vmatprep.subr.mxu0 0.0
    %212 = vmatpush1.msra.mxu0 0.0
    %213 = vmatprep.mubr.f32.mxu0 0.0
    %214 = vmatmul.mubr.f32.gmra.mrb[0].mxu0 %v138
    %v215 = vpop.f32.mrb[0].mxu0
    %v216 = vadd.f32 0.0, %v215
    %v217 = vpop.f32.mrb[0].mxu0
    %218 = vmatprep.mubr.f32.mxu0 0.0
    %219 = vmatmul.mubr.f32.gmra.mrb[0].mxu0 %v141
    %v220 = vpop.f32.mrb[0].mxu0
    %v221 = vadd.f32 0.0, %v220
    %v222 = vpop.f32.mrb[0].mxu0
    %223 = vmatprep.mubr.f32.mxu0 0.0
    %224 = vmatmul.mubr.f32.gmra.mrb[0].mxu0 %v144
    %v225 = vpop.f32.mrb[0].mxu0
    %v226 = vadd.f32 0.0, %v225
    %v227 = vpop.f32.mrb[0].mxu0
    %228 = vmatprep.mubr.f32.mxu0 0.0
    %229 = vmatmul.mubr.f32.gmra.mrb[0].mxu0 %v147
    %v230 = vpop.f32.mrb[0].mxu0
    %v231 = vadd.f32 0.0, %v230
    %v232 = vpop.f32.mrb[0].mxu0
    %233 = vdwg.mxu0
    %v234 = vld [vmem:[%s2] sm:$0xff]
    %v235 = vld [vmem:[%s2 + $0x8] sm:$0xff]
    %v236 = vld [vmem:[%s2 + $0x10] sm:$0xff]
    %v237 = vld [vmem:[%s2 + $0x18] sm:$0x3]
    %v238 = vadd.f32 %v234, %v216
    %v239 = vadd.f32 %v235, %v221
    %v240 = vadd.f32 %v236, %v226
    %v241 = vadd.f32 %v237, %v231
    %242 = vst [vmem:[#allocation2] sm:$0xff] %v238
    %243 = vst [vmem:[#allocation2 + $0x8] sm:$0xff] %v239
    %244 = vst [vmem:[#allocation2 + $0x10] sm:$0xff] %v240
    %245 = vst [vmem:[#allocation2 + $0x18] sm:$0x3] %v241
    // Predicated region
    $region18: #{tpu_custom_call.1} parent=1 // pred_check
      _
    $region19: #{tpu_custom_call.1} parent=1 // pred_check_branch
      %247 = sbr.rel (0) target = $region21
    $region20: #{tpu_custom_call.1} parent=1 // pred_region
      %s249 = ssub.s32 512, 512
      %250 = vsyncadd [#allocation3], %s249
      %s251 = sshll.u32 [#allocation2], 4
      %s252 = int_to_ptr.vmem [resolvable:$true] %s251
      %257 = dma.vmem_to_hbm [thread:$0]  %s252, 512, %s4, [#allocation3], 128, 128, 8
    $region21: #{tpu_custom_call.1} parent=1 // pred_fallthru
      _
    // Predicated region
    $region22: #{tpu_custom_call.1} parent=1 // pred_check
      _
    $region23: #{tpu_custom_call.1} parent=1 // pred_check_branch
      %259 = sbr.rel (0) target = $region25
    $region24: #{tpu_custom_call.1} parent=1 // pred_region
      %260 = dma.done [#allocation3], 512
    $region25: #{tpu_custom_call.1} parent=1 // pred_fallthru
      _
    %261 = vsyncpa [#allocation3], 1

</llo_original>
